<compile_context>
chip_gen: v5e
topology: v5e:2x2
jax: 0.10.0
libtpu: 0.0.40
codegen_flags: <defaults>
</compile_context>

<pallas_src>
import functools

import jax
import jax.numpy as jnp
from jax.experimental import pallas as pl
from jax.experimental.pallas import tpu as pltpu


def _choose_rows_tile(num_channels, num_rows, bytes_per_px_pair):
    """Rows (of 128 pixels) per grid step: ~4 MiB HBM traffic per step, VMEM-capped."""
    bytes_per_row = num_channels * 128 * bytes_per_px_pair      # both inputs, one 128-px row
    target = (4 << 20) // max(bytes_per_row, 1)                 # ~4 MiB of HBM per grid step
    cap = (16 << 20) // max(2 * bytes_per_row, 1)               # double-buffered inputs <= 16 MiB
    rows = max(8, min(target, cap))
    rows = (rows // 8) * 8                                      # (8, 128) block constraint
    if rows >= num_rows:
        return num_rows                                         # single tile: full dim is legal
    return rows


def _rce_kernel(s_ref, t_ref, out_ref, *, eps, num_px, rows_tile, needs_mask):
    """Fused channel-softmax + reverse-CE partial for one (batch, pixel-row-tile).

    s_ref, t_ref : (C, rows_tile, 128) student logits / teacher soft targets (native dtype)
    out_ref      : (8, 128)            per-tile partial sum, scalar broadcast-filled
    """
    s = s_ref[...].astype(jnp.float32)                  # (C, r, 128)
    t = t_ref[...].astype(jnp.float32)

    # Softmax over the leading channel dim: elementwise across C (r,128) slabs (no XLU).
    m = jnp.max(s, axis=0, keepdims=True)               # (1, r, 128)
    e = jnp.exp(s - m)                                   # EUP
    denom = jnp.sum(e, axis=0)                           # (r, 128)

    # Reverse-CE weight: sum_c exp(s_c - m) * log(clamp(t_c, eps, 1)).
    # Keep the two-sided clamp to match torch.clamp(t, eps, 1.0) exactly.
    log_t = jnp.log(jnp.clip(t, eps, 1.0))                # EUP
    w = jnp.sum(e * log_t, axis=0)                        # (r, 128)

    # One divide per pixel, after the C reduction.
    contrib = w * pl.reciprocal(denom, approx=False)      # (r, 128)

    if needs_mask:
        # Mask the ragged tail: lane padding past H*W and/or the partial last row-tile
        # (Pallas edge-block fill is unspecified -> must not feed the accumulation).
        i = pl.program_id(1)
        rows = contrib.shape[0]
        row = jax.lax.broadcasted_iota(jnp.int32, (rows, 128), 0)
        lane = jax.lax.broadcasted_iota(jnp.int32, (rows, 128), 1)
        flat = (i * rows_tile + row) * 128 + lane
        contrib = jnp.where(flat < num_px, contrib, 0.0)

    total = jnp.sum(contrib)                               # per-tile scalar partial
    out_ref[...] = jnp.zeros_like(out_ref) + total         # broadcast; wrapper reads [0, 0]


def reverse_cross_entropy_loss(student_logits, teacher_soft_targets, *, eps=1e-8):
    """ReverseCrossEntropyLoss.forward: -mean_{n,h,w} sum_c softmax(s)_c * log(clamp(t_c))."""
    N, C, H, W = student_logits.shape
    HW = H * W
    R = pl.cdiv(HW, 128)
    hw_pad = R * 128

    s = student_logits.reshape(N, C, HW)
    t = teacher_soft_targets.reshape(N, C, HW)
    if hw_pad != HW:
        # Only when H*W is not lane-aligned: pad < 128 pixels; padded pixels are masked
        # out inside the kernel, so pad contents are irrelevant.
        s = jnp.pad(s, ((0, 0), (0, 0), (0, hw_pad - HW)))
        t = jnp.pad(t, ((0, 0), (0, 0), (0, hw_pad - HW)))
    s = s.reshape(N, C, R, 128)        # channels leading, pixels on (sublane, lane)
    t = t.reshape(N, C, R, 128)

    rows_tile = _choose_rows_tile(C, R, s.dtype.itemsize + t.dtype.itemsize)
    n_tiles = pl.cdiv(R, rows_tile)
    needs_mask = (hw_pad != HW) or (R % rows_tile != 0)

    partials = pl.pallas_call(
        functools.partial(_rce_kernel, eps=eps, num_px=HW,
                          rows_tile=rows_tile, needs_mask=needs_mask),
        out_shape=jax.ShapeDtypeStruct((N, n_tiles, 8, 128), jnp.float32),
        grid_spec=pltpu.PrefetchScalarGridSpec(
            num_scalar_prefetch=0,
            grid=(N, n_tiles),
            in_specs=[
                pl.BlockSpec((None, C, rows_tile, 128), lambda n, i: (n, 0, i, 0)),
                pl.BlockSpec((None, C, rows_tile, 128), lambda n, i: (n, 0, i, 0)),
            ],
            out_specs=pl.BlockSpec((None, None, 8, 128), lambda n, i: (n, i, 0, 0)),
        ),
        compiler_params=pltpu.CompilerParams(
            dimension_semantics=("parallel", "parallel"),
            vmem_limit_bytes=48 << 20),
    )(s, t)

    rce_sum = jnp.sum(partials[:, :, 0, 0])     # sum of per-(batch, tile) scalar partials
    return -rce_sum / (N * HW)                  # mean over the UNPADDED N*H*W pixels


def dice_reverse_ce_loss(student_logits, weak_soft_labels, ground_truth=None,
                         *, weight_dice=1.0, weight_rce=1.0, eps=1e-8):
    """JAX/Pallas equivalent of DiceReverseCELoss.forward."""
    loss = jnp.float32(0.0)
    if ground_truth is not None:
        # TODO(synk): add the weight_dice * SoftDiceLoss(student_logits, ground_truth)
        #             term once the SoftDiceLoss definition is available.
        raise NotImplementedError("SoftDiceLoss (ground_truth branch) not implemented")
    loss = loss + weight_rce * reverse_cross_entropy_loss(
        student_logits, weak_soft_labels, eps=eps)
    return loss


def _reference(student_logits, weak_soft_labels, *, weight_rce=1.0, eps=1e-8):
    """Pure-JAX reference mirroring DiceReverseCELoss (ground_truth=None path)."""
    p = jax.nn.softmax(student_logits.astype(jnp.float32), axis=1)
    t = jnp.clip(weak_soft_labels.astype(jnp.float32), eps, 1.0)
    rce = -jnp.mean(jnp.sum(p * jnp.log(t), axis=1))
    return weight_rce * rce


if __name__ == "__main__":
    key = jax.random.PRNGKey(0)
    k1, k2 = jax.random.split(key)

    N, C, H, W = 2, 4, 16, 16
    student_logits = jax.random.normal(k1, (N, C, H, W), dtype=jnp.float32)
    # Teacher soft targets: valid probability distributions over channels.
    weak_soft_labels = jax.nn.softmax(
        jax.random.normal(k2, (N, C, H, W), dtype=jnp.float32), axis=1)

    loss = dice_reverse_ce_loss(student_logits, weak_soft_labels,
                                weight_rce=1.0, eps=1e-8)
    loss = jax.block_until_ready(loss)

    ref = _reference(student_logits, weak_soft_labels, weight_rce=1.0, eps=1e-8)
    assert jnp.allclose(loss, ref, rtol=1e-5, atol=1e-5), (loss, ref)

    print("KERNEL_OK")
</pallas_src>

<mosaic_0001>
module attributes {stable_mosaic.version = 11 : i64} {
  func.func @_rce_kernel(%arg0: i32, %arg1: i32, %arg2: memref<1x4x2x128xf32, #tpu.memory_space<vmem>>, %arg3: memref<1x4x2x128xf32, #tpu.memory_space<vmem>>, %arg4: memref<1x1x8x128xf32, #tpu.memory_space<vmem>>) attributes {dimension_semantics = [#tpu.dimension_semantics<parallel>, #tpu.dimension_semantics<parallel>], iteration_bounds = array<i64: 2, 1>, scalar_prefetch = 0 : i64, scratch_operands = 0 : i64, tpu.core_type = #tpu.core_type<tc>, window_params = [{transform_indices = @transform_0, window_bounds = array<i64: 1, 4, 2, 128>}, {transform_indices = @transform_1, window_bounds = array<i64: 1, 4, 2, 128>}, {transform_indices = @transform_2, window_bounds = array<i64: 1, 1, 8, 128>}]} {
    %c0 = arith.constant 0 : index
    %c0_0 = arith.constant 0 : index
    %c0_1 = arith.constant 0 : index
    %c0_2 = arith.constant 0 : index
    %0 = vector.load %arg2[%c0, %c0_0, %c0_1, %c0_2] : memref<1x4x2x128xf32, #tpu.memory_space<vmem>>, vector<1x4x2x128xf32>
    %1 = vector.shape_cast %0 : vector<1x4x2x128xf32> to vector<4x2x128xf32>
    %c0_3 = arith.constant 0 : index
    %c0_4 = arith.constant 0 : index
    %c0_5 = arith.constant 0 : index
    %c0_6 = arith.constant 0 : index
    %2 = vector.load %arg3[%c0_3, %c0_4, %c0_5, %c0_6] : memref<1x4x2x128xf32, #tpu.memory_space<vmem>>, vector<1x4x2x128xf32>
    %3 = vector.shape_cast %2 : vector<1x4x2x128xf32> to vector<4x2x128xf32>
    %cst = arith.constant dense<0xFF800000> : vector<2x128xf32>
    %4 = vector.multi_reduction <maximumf>, %1, %cst [0] : vector<4x2x128xf32> to vector<2x128xf32>
    %5 = vector.shape_cast %4 : vector<2x128xf32> to vector<1x2x128xf32>
    %6 = vector.broadcast %5 : vector<1x2x128xf32> to vector<4x2x128xf32>
    %7 = arith.subf %1, %6 : vector<4x2x128xf32>
    %8 = math.exp %7 : vector<4x2x128xf32>
    %cst_7 = arith.constant dense<0.000000e+00> : vector<2x128xf32>
    %9 = vector.multi_reduction <add>, %8, %cst_7 [0] : vector<4x2x128xf32> to vector<2x128xf32>
    %cst_8 = arith.constant 9.99999993E-9 : f32
    %cst_9 = arith.constant 1.000000e+00 : f32
    %10 = vector.broadcast %cst_8 : f32 to vector<4x2x128xf32>
    %11 = arith.maximumf %10, %3 : vector<4x2x128xf32>
    %12 = vector.broadcast %cst_9 : f32 to vector<4x2x128xf32>
    %13 = arith.minimumf %12, %11 : vector<4x2x128xf32>
    %14 = math.log %13 : vector<4x2x128xf32>
    %15 = arith.mulf %8, %14 : vector<4x2x128xf32>
    %cst_10 = arith.constant dense<0.000000e+00> : vector<2x128xf32>
    %16 = vector.multi_reduction <add>, %15, %cst_10 [0] : vector<4x2x128xf32> to vector<2x128xf32>
    %17 = tpu.reciprocal %9 : vector<2x128xf32> -> vector<2x128xf32>
    %18 = arith.mulf %16, %17 : vector<2x128xf32>
    %19 = vector.shape_cast %18 : vector<2x128xf32> to vector<1x2x128xf32>
    %cst_11 = arith.constant dense<0.000000e+00> : vector<1xf32>
    %20 = vector.multi_reduction <add>, %19, %cst_11 [1, 2] : vector<1x2x128xf32> to vector<1xf32>
    %21 = vector.shape_cast %20 : vector<1xf32> to vector<1x1x1xf32>
    %22 = vector.extract %21[0, 0, 0] : f32 from vector<1x1x1xf32>
    %cst_12 = arith.constant 0.000000e+00 : f32
    %23 = vector.broadcast %cst_12 : f32 to vector<8x128xf32>
    %24 = vector.broadcast %22 : f32 to vector<8x128xf32>
    %25 = arith.addf %23, %24 : vector<8x128xf32>
    %c0_13 = arith.constant 0 : index
    %c0_14 = arith.constant 0 : index
    %c0_15 = arith.constant 0 : index
    %c0_16 = arith.constant 0 : index
    %26 = vector.load %arg4[%c0_13, %c0_14, %c0_15, %c0_16] : memref<1x1x8x128xf32, #tpu.memory_space<vmem>>, vector<1x1x8x128xf32>
    %27 = vector.shape_cast %26 : vector<1x1x8x128xf32> to vector<8x128xf32>
    %28 = vector.shape_cast %25 : vector<8x128xf32> to vector<1x1x8x128xf32>
    tpu.vector_store %arg4[%c0_13, %c0_14, %c0_15, %c0_16], %28 {strides = array<i32>} : memref<1x1x8x128xf32, #tpu.memory_space<vmem>>, vector<1x1x8x128xf32>,
    return
  }
  func.func @transform_0(%arg0: i32, %arg1: i32) -> (i32, i32, i32, i32) {
    %c0_i32 = arith.constant 0 : i32
    %c0_i32_0 = arith.constant 0 : i32
    %c0_i32_1 = arith.constant 0 : i32
    return %arg0, %c0_i32, %arg1, %c0_i32_0 : i32, i32, i32, i32
  }
  func.func @transform_1(%arg0: i32, %arg1: i32) -> (i32, i32, i32, i32) {
    %c0_i32 = arith.constant 0 : i32
    %c0_i32_0 = arith.constant 0 : i32
    %c0_i32_1 = arith.constant 0 : i32
    return %arg0, %c0_i32, %arg1, %c0_i32_0 : i32, i32, i32, i32
  }
  func.func @transform_2(%arg0: i32, %arg1: i32) -> (i32, i32, i32, i32) {
    %c0_i32 = arith.constant 0 : i32
    %c0_i32_0 = arith.constant 0 : i32
    %c0_i32_1 = arith.constant 0 : i32
    return %arg0, %arg1, %c0_i32, %c0_i32_0 : i32, i32, i32, i32
  }
}

</mosaic_0001>

<llo_original>
// kernel: tpu_custom_call.1
$region0: #{tpu_custom_call.1}
  #allocation0 [shape = 'u32[]', space=smem, size = 0x4, offset = 0x4, fixed_abs, tag = 'smem constant byte address 0x4 - core index']
  #allocation1 [shape = 'u32[72,128]{1,0:T(1,128)}', space=vmem, size = 0x9000, scoped, tag = 'internal scratch']
  %s0 = inlined_call_operand.hbm [shape: f32[2,4,2,128], index: 0, kind: input, shape index: {}]
  %s1 = inlined_call_operand.hbm [shape: f32[2,4,2,128], index: 1, kind: input, shape index: {}]
  %s2 = inlined_call_operand.hbm [shape: f32[2,1,8,128], index: 2, kind: output, shape index: {}]
  %s3 = sld [smem:[#allocation0]]
  $region49: #{tpu_custom_call.1} parent=0
    _
  %s5 = ssub.s32 1, %s3
  %s6 = scalar_select 0, %s5, %s3
  $region1: #{tpu_custom_call.1} parent=0
    #allocation2 [shape = 'u8[8192]{0}', space=vmem, size = 0x2000, scoped, tag = 'input window, operand 0']
    #allocation3 [shape = 's32[2]{0}', space=sflag, size = 0x8, scoped, tag = 'scoped memory for tpu_custom_call.1']
    #allocation4 [shape = 's32[2]{0}', space=sflag, size = 0x8, scoped, tag = 'scoped memory for tpu_custom_call.1']
    #allocation5 [shape = 'u8[8192]{0}', space=vmem, size = 0x2000, scoped, tag = 'input window, operand 1']
    #allocation6 [shape = 's32[2]{0}', space=sflag, size = 0x8, scoped, tag = 'scoped memory for tpu_custom_call.1']
    #allocation7 [shape = 'u8[8192]{0}', space=vmem, size = 0x2000, scoped, tag = 'output window, operand 0']
    %7 = vsyncpa [#allocation3], 0
    %s8 = scalar_lea.sflag [#allocation3], 1
    %9 = vsyncpa %s8, 0
    %10 = vsyncpa [#allocation6], 0
    %s11 = scalar_lea.sflag [#allocation6], 1
    %12 = vsyncpa %s11, 0
    %13 = vsyncpa [#allocation4], 0
    %s14 = scalar_lea.sflag [#allocation4], 1
    %15 = vsyncpa %s14, 0
    loop: start=0, step=1, limit=4
    $region2: #{tpu_custom_call.1} parent=1 // loop_pre_header
      _
    $region3: #{tpu_custom_call.1} parent=1 // loop_header
      %s17 = sphi 0, %s21
      %p18 = scmp.ge.s32.totalorder %s17, 4
      %s24 = sphi 0, %s36
      %s25 = sphi 0, %s32
      %s26 = sphi 0, %s24
      %s27 = sphi 0, %s25
      %s28 = sphi 0, %s26
      %s29 = sphi 0, %s27
      %s41 = sphi 0, %s43
      %s44 = sphi 0, %s41
      %s45 = sphi 0, %s44
      %s61 = sphi 0, %s45
      %s69 = sphi 0, %s71
      %s72 = sphi 0, %s69
      %s73 = sphi 0, %s72
      %s89 = sphi 0, %s73
      %s97 = sphi 0, %s99
      %s100 = sphi 0, %s97
      %s101 = sphi 0, %s100
      %s117 = sphi 0, %s101
    $region4: #{tpu_custom_call.1} parent=1 // loop_header_branch
      %20 = sbr.rel (%p18) target = $region8
    $region5: #{tpu_custom_call.1} parent=1 // loop_body
      %s22 = ssub.s32 %s17, 1
      %s23 = ssub.s32 %s17, 2
      %s30 = sadd.s32 1, %s25
      %p31 = scmp.ge.s32.totalorder %s30, 1
      %s32 = scalar_select %p31, 0, %s30
      %s33 = sadd.s32 1, %s24
      %s34 = scalar_select %p31, %s33, %s24
      %p35 = scmp.ge.s32.totalorder %s34, 2
      %s36 = scalar_select %p35, 0, %s34
      %s37 = ssub.s32 %s24, %s36
      %s38 = ssub.s32 %s25, %s32
      %s39 = sor.u32 %s37, %s38
      %p40 = scmp.eq.s32.totalorder %s39, 0
      %s42 = sadd.s32 %s41, 1
      %s43 = scalar_select %p40, %s41, %s42
      %p46 = pneg %p40
      %p47 = scmp.eq.s32.totalorder %s17, 1
      %p48 = por %p46, %p47
      %p49 = scmp.ne.s32.totalorder %s41, %s44
      %p50 = scmp.eq.s32.totalorder %s17, 0
      %p51 = por %p49, %p50
      %p52 = scmp.ne.s32.totalorder %s41, %s44
      %p53 = scmp.eq.s32.totalorder %s22, 1
      %p54 = por %p52, %p53
      %p55 = scmp.ne.s32.totalorder %s44, %s45
      %p56 = scmp.eq.s32.totalorder %s22, 0
      %p57 = por %p55, %p56
      %p58 = scmp.ne.s32.totalorder %s44, %s45
      %p59 = scmp.eq.s32.totalorder %s23, 1
      %p60 = por %p58, %p59
      %p62 = scmp.ne.s32.totalorder %s45, %s61
      %p63 = scmp.eq.s32.totalorder %s23, 0
      %p64 = por %p62, %p63
      %s65 = ssub.s32 %s24, %s36
      %s66 = ssub.s32 %s25, %s32
      %s67 = sor.u32 %s65, %s66
      %p68 = scmp.eq.s32.totalorder %s67, 0
      %s70 = sadd.s32 %s69, 1
      %s71 = scalar_select %p68, %s69, %s70
      %p74 = pneg %p68
      %p75 = scmp.eq.s32.totalorder %s17, 1
      %p76 = por %p74, %p75
      %p77 = scmp.ne.s32.totalorder %s69, %s72
      %p78 = scmp.eq.s32.totalorder %s17, 0
      %p79 = por %p77, %p78
      %p80 = scmp.ne.s32.totalorder %s69, %s72
      %p81 = scmp.eq.s32.totalorder %s22, 1
      %p82 = por %p80, %p81
      %p83 = scmp.ne.s32.totalorder %s72, %s73
      %p84 = scmp.eq.s32.totalorder %s22, 0
      %p85 = por %p83, %p84
      %p86 = scmp.ne.s32.totalorder %s72, %s73
      %p87 = scmp.eq.s32.totalorder %s23, 1
      %p88 = por %p86, %p87
      %p90 = scmp.ne.s32.totalorder %s73, %s89
      %p91 = scmp.eq.s32.totalorder %s23, 0
      %p92 = por %p90, %p91
      %s93 = ssub.s32 %s24, %s36
      %s94 = ssub.s32 %s25, %s32
      %s95 = sor.u32 %s93, %s94
      %p96 = scmp.eq.s32.totalorder %s95, 0
      %s98 = sadd.s32 %s97, 1
      %s99 = scalar_select %p96, %s97, %s98
      %p102 = pneg %p96
      %p103 = scmp.eq.s32.totalorder %s17, 1
      %p104 = por %p102, %p103
      %p105 = scmp.ne.s32.totalorder %s97, %s100
      %p106 = scmp.eq.s32.totalorder %s17, 0
      %p107 = por %p105, %p106
      %p108 = scmp.ne.s32.totalorder %s97, %s100
      %p109 = scmp.eq.s32.totalorder %s22, 1
      %p110 = por %p108, %p109
      %p111 = scmp.ne.s32.totalorder %s100, %s101
      %p112 = scmp.eq.s32.totalorder %s22, 0
      %p113 = por %p111, %p112
      %p114 = scmp.ne.s32.totalorder %s100, %s101
      %p115 = scmp.eq.s32.totalorder %s23, 1
      %p116 = por %p114, %p115
      %p118 = scmp.ne.s32.totalorder %s101, %s117
      %p119 = scmp.eq.s32.totalorder %s23, 0
      %p120 = por %p118, %p119
      %p121 = scmp.le.s32.totalorder 1, %s17
      %p122 = scmp.lt.s32.totalorder %s17, 3
      %p123 = pnand %p121, %p122
      %p124 = pneg %p123
      // Predicated region
      $region9: #{tpu_custom_call.1} parent=5 // pred_check
        _
      $region10: #{tpu_custom_call.1} parent=5 // pred_check_branch
        %126 = sbr.rel (%p123) target = $region12
      $region11: #{tpu_custom_call.1} parent=5 // pred_region
        %s127 = ssub.s32 %s17, 1
      $region12: #{tpu_custom_call.1} parent=5 // pred_fallthru
        _
      %p128 = scmp.lt.s32.totalorder %s17, 2
      // Predicated region
      $region13: #{tpu_custom_call.1} parent=5 // pred_check
        %p129 = pneg %p128
      $region14: #{tpu_custom_call.1} parent=5 // pred_check_branch
        %131 = sbr.rel (%p129) target = $region16
      $region15: #{tpu_custom_call.1} parent=5 // pred_region
        // Predicated region
        $region17: #{tpu_custom_call.1} parent=15 // pred_check
          %p132 = pneg %p51
        $region18: #{tpu_custom_call.1} parent=15 // pred_check_branch
          %134 = sbr.rel (%p132) target = $region20
        $region19: #{tpu_custom_call.1} parent=15 // pred_region
          %s135 = sand.u32 %s41, 1
          %s136 = scalar_lea.sflag [#allocation3], %s135
          %s137 = sand.u32 %s41, 1
          %s138 = smul.addr %s137, 8
          %s139 = scalar_lea.vmem [#allocation2], %s138
          %141 = vsyncadd %s136, 0
          %s142 = smul.addr %s24, 4
          %s143 = sadd.s32 %s25, %s142
          %s144 = smul.addr %s143, 2
          %s145 = scalar_lea.hbm %s0, %s144
          %s146 = sshll.u32 %s145, 4
          %s147 = int_to_ptr.hbm [resolvable:$true] %s146
          %s148 = sshll.u32 %s139, 4
          %s149 = int_to_ptr.vmem [resolvable:$true] %s148
          %154 = dma.hbm_to_vmem [thread:$0]  %s147, 128, %s149, %s136, 32, 32, 2
        $region20: #{tpu_custom_call.1} parent=15 // pred_fallthru
          _
        // Predicated region
        $region21: #{tpu_custom_call.1} parent=15 // pred_check
          %p155 = pneg %p79
        $region22: #{tpu_custom_call.1} parent=15 // pred_check_branch
          %157 = sbr.rel (%p155) target = $region24
        $region23: #{tpu_custom_call.1} parent=15 // pred_region
          %s158 = sand.u32 %s69, 1
          %s159 = scalar_lea.sflag [#allocation6], %s158
          %s160 = sand.u32 %s69, 1
          %s161 = smul.addr %s160, 8
          %s162 = scalar_lea.vmem [#allocation5], %s161
          %164 = vsyncadd %s159, 0
          %s165 = smul.addr %s24, 4
          %s166 = sadd.s32 %s25, %s165
          %s167 = smul.addr %s166, 2
          %s168 = scalar_lea.hbm %s1, %s167
          %s169 = sshll.u32 %s168, 4
          %s170 = int_to_ptr.hbm [resolvable:$true] %s169
          %s171 = sshll.u32 %s162, 4
          %s172 = int_to_ptr.vmem [resolvable:$true] %s171
          %177 = dma.hbm_to_vmem [thread:$0]  %s170, 128, %s172, %s159, 32, 32, 2
        $region24: #{tpu_custom_call.1} parent=15 // pred_fallthru
          _
      $region16: #{tpu_custom_call.1} parent=5 // pred_fallthru
        _
      %p178 = scmp.le.s32.totalorder 1, %s17
      %p179 = scmp.lt.s32.totalorder %s17, 3
      %p180 = pnand %p178, %p179
      %p181 = pneg %p180
      // Predicated region
      $region25: #{tpu_custom_call.1} parent=5 // pred_check
        _
      $region26: #{tpu_custom_call.1} parent=5 // pred_check_branch
        %183 = sbr.rel (%p180) target = $region28
      $region27: #{tpu_custom_call.1} parent=5 // pred_region
        %s184 = ssub.s32 %s17, 1
        %s185 = sand.u32 %s44, 1
        %s186 = scalar_lea.sflag [#allocation3], %s185
        %s187 = sand.u32 %s44, 1
        %s188 = smul.addr %s187, 8
        %s189 = scalar_lea.vmem [#allocation2], %s188
        // Predicated region
        $region29: #{tpu_custom_call.1} parent=27 // pred_check
          %p190 = pneg %p57
        $region30: #{tpu_custom_call.1} parent=27 // pred_check_branch
          %192 = sbr.rel (%p190) target = $region32
        $region31: #{tpu_custom_call.1} parent=27 // pred_region
          %194 = dma.done %s186, 128
        $region32: #{tpu_custom_call.1} parent=27 // pred_fallthru
          _
        %s195 = sand.u32 %s72, 1
        %s196 = scalar_lea.sflag [#allocation6], %s195
        %s197 = sand.u32 %s72, 1
        %s198 = smul.addr %s197, 8
        %s199 = scalar_lea.vmem [#allocation5], %s198
        // Predicated region
        $region33: #{tpu_custom_call.1} parent=27 // pred_check
          %p200 = pneg %p85
        $region34: #{tpu_custom_call.1} parent=27 // pred_check_branch
          %202 = sbr.rel (%p200) target = $region36
        $region35: #{tpu_custom_call.1} parent=27 // pred_region
          %204 = dma.done %s196, 128
        $region36: #{tpu_custom_call.1} parent=27 // pred_fallthru
          _
        %s205 = sand.u32 %s44, 1
        %s206 = scalar_lea.sflag [#allocation3], %s205
        %s207 = sand.u32 %s44, 1
        %s208 = smul.addr %s207, 8
        %s209 = scalar_lea.vmem [#allocation2], %s208
        %p210 = pneg %p57
        %p211 = pneg %p54
        %s212 = sand.u32 %s72, 1
        %s213 = scalar_lea.sflag [#allocation6], %s212
        %s214 = sand.u32 %s72, 1
        %s215 = smul.addr %s214, 8
        %s216 = scalar_lea.vmem [#allocation5], %s215
        %p217 = pneg %p85
        %p218 = pneg %p82
        %p219 = pneg %p113
        %p220 = pneg %p110
        %s221 = sand.u32 %s100, 1
        %s222 = scalar_lea.sflag [#allocation4], %s221
        %s223 = sand.u32 %s100, 1
        %s224 = smul.addr %s223, 8
        %s225 = scalar_lea.vmem [#allocation7], %s224
        %v226 = vld [vmem:[%s189] sm:$0x3]
        %v227 = vld [vmem:[%s189 + $0x2] sm:$0x3]
        %v228 = vld [vmem:[%s189 + $0x4] sm:$0x3]
        %v229 = vld [vmem:[%s189 + $0x6] sm:$0x3]
        %v230 = vld [vmem:[%s199] sm:$0x3]
        %v231 = vld [vmem:[%s199 + $0x2] sm:$0x3]
        %v232 = vld [vmem:[%s199 + $0x4] sm:$0x3]
        %v233 = vld [vmem:[%s199 + $0x6] sm:$0x3]
        %vm234 = vcmask 1041408
        %v235 = vsel %vm234, %v226, -inf
        %v236 = vsel %vm234, %v227, -inf
        %v237 = vsel %vm234, %v228, -inf
        %v238 = vsel %vm234, %v229, -inf
        %v239 = vmax.f32 %v235, %v236
        %v240 = vmax.f32 %v237, %v238
        %v241 = vmax.f32 %v239, %v240
        %v242 = vsub.f32 %v226, %v241
        %v243 = vsub.f32 %v227, %v241
        %v244 = vsub.f32 %v228, %v241
        %v245 = vsub.f32 %v229, %v241
        %v246 = vmul.f32 %v242, 1.442695
        %v247 = vpow.pop %v246
        %v248 = vmul.f32 %v243, 1.442695
        %v249 = vpow.pop %v248
        %v250 = vmul.f32 %v244, 1.442695
        %v251 = vpow.pop %v250
        %v252 = vmul.f32 %v245, 1.442695
        %v253 = vpow.pop %v252
        %v254 = vsel %vm234, %v247, 0.0
        %v255 = vsel %vm234, %v249, 0.0
        %v256 = vadd.f32 %v254, %v255
        %v257 = vsel %vm234, %v251, 0.0
        %v258 = vadd.f32 %v256, %v257
        %v259 = vsel %vm234, %v253, 0.0
        %v260 = vadd.f32 %v258, %v259
        %v261 = vmax.f32 %v230, 1e-08
        %v262 = vmax.f32 %v231, 1e-08
        %v263 = vmax.f32 %v232, 1e-08
        %v264 = vmax.f32 %v233, 1e-08
        %v265 = vmin.f32 %v261, 1.0
        %v266 = vmin.f32 %v262, 1.0
        %v267 = vmin.f32 %v263, 1.0
        %v268 = vmin.f32 %v264, 1.0
        %v269 = vlog2.pop %v265
        %v270 = vmul.f32 %v269, 0.6931472
        %v271 = vlog2.pop %v266
        %v272 = vmul.f32 %v271, 0.6931472
        %v273 = vlog2.pop %v267
        %v274 = vmul.f32 %v273, 0.6931472
        %v275 = vlog2.pop %v268
        %v276 = vmul.f32 %v275, 0.6931472
        %v277 = vmul.f32 %v247, %v270
        %v278 = vmul.f32 %v249, %v272
        %v279 = vmul.f32 %v251, %v274
        %v280 = vmul.f32 %v253, %v276
        %v281 = vsel %vm234, %v277, 0.0
        %v282 = vsel %vm234, %v278, 0.0
        %v283 = vadd.f32 %v281, %v282
        %v284 = vsel %vm234, %v279, 0.0
        %v285 = vadd.f32 %v283, %v284
        %v286 = vsel %vm234, %v280, 0.0
        %v287 = vadd.f32 %v285, %v286
        %v288 = vrcp.pop %v260
        %v289 = vmul.f32 %v260, %v288
        %v290 = vsub.f32 1.0, %v289
        %v291 = vmul.f32 %v288, %v290
        %v292 = vadd.f32 %v288, %v291
        %vm293 = vweird.f32 %v260
        %vm294 = vweird.f32 %v288
        %vm295 = vmor %vm293, %vm294
        %v296 = vsel %vm295, %v288, %v292
        %v297 = vand.u32 2147483647, %v260
        %vm298 = vcmp.eq.f32.partialorder %v297, 8.507059e+37
        %v299 = vand.u32 %v260, 2147483648
        %v300 = vor.u32 1.1754944e-38, %v299
        %v301 = vsel %vm298, %v300, %v296
        %v302 = vmul.f32 %v287, %v301
        %v303 = vsel %vm234, %v302, 0.0
        %304 = vadd.xlane.f32.xlu0 %v303
        %v305 = vpop.xlane.xlu0 %304
        %v306 = vrot.slane %v305, 4
        %v307 = vadd.f32 %v305, %v306
        %v308 = vrot.slane %v307, 2
        %v309 = vadd.f32 %v307, %v308
        %v310 = vrot.slane %v309, 1
        %v311 = vadd.f32 %v309, %v310
        %s312 = vtos %v311
        %v313 = vstv %s312
        %v314 = vadd.f32 %v313, 0.0
        %315 = vst [vmem:[%s225] sm:$0xff] %v314
        %s316 = sand.u32 %s100, 1
        %s317 = scalar_lea.sflag [#allocation4], %s316
        %s318 = sand.u32 %s100, 1
        %s319 = smul.addr %s318, 8
        %s320 = scalar_lea.vmem [#allocation7], %s319
        // Predicated region
        $region37: #{tpu_custom_call.1} parent=27 // pred_check
          %p321 = pneg %p110
        $region38: #{tpu_custom_call.1} parent=27 // pred_check_branch
          %323 = sbr.rel (%p321) target = $region40
        $region39: #{tpu_custom_call.1} parent=27 // pred_region
          %325 = vsyncadd %s317, 0
          %s326 = sadd.s32 %s27, %s26
          %s327 = smul.addr %s326, 8
          %s328 = scalar_lea.hbm %s2, %s327
          %s330 = sshll.u32 %s320, 4
          %s331 = int_to_ptr.vmem [resolvable:$true] %s330
          %s332 = sshll.u32 %s328, 4
          %s333 = int_to_ptr.hbm [resolvable:$true] %s332
          %335 = dma.vmem_to_hbm [thread:$0]  %s331, 128, %s333, %s317
        $region40: #{tpu_custom_call.1} parent=27 // pred_fallthru
          _
      $region28: #{tpu_custom_call.1} parent=5 // pred_fallthru
        _
      %p336 = scmp.le.s32.totalorder 2, %s17
      // Predicated region
      $region41: #{tpu_custom_call.1} parent=5 // pred_check
        %p337 = pneg %p336
      $region42: #{tpu_custom_call.1} parent=5 // pred_check_branch
        %339 = sbr.rel (%p337) target = $region44
      $region43: #{tpu_custom_call.1} parent=5 // pred_region
        %s340 = ssub.s32 %s17, 2
        // Predicated region
        $region45: #{tpu_custom_call.1} parent=43 // pred_check
          %p341 = pneg %p116
        $region46: #{tpu_custom_call.1} parent=43 // pred_check_branch
          %343 = sbr.rel (%p341) target = $region48
        $region47: #{tpu_custom_call.1} parent=43 // pred_region
          %s344 = sand.u32 %s101, 1
          %s345 = scalar_lea.sflag [#allocation4], %s344
          %s346 = sand.u32 %s101, 1
          %s347 = smul.addr %s346, 8
          %s348 = scalar_lea.vmem [#allocation7], %s347
          %350 = dma.done %s345, 128
        $region48: #{tpu_custom_call.1} parent=43 // pred_fallthru
          _
      $region44: #{tpu_custom_call.1} parent=5 // pred_fallthru
        _
    $region6: #{tpu_custom_call.1} parent=1 // loop_footer
      %s21 = sadd.s32 1, %s17
    $region7: #{tpu_custom_call.1} parent=1 // loop_footer_branch
      %16 = sbr.rel target = $region3
    $region8: #{tpu_custom_call.1} parent=1 // loop_exit
      _
    %351 = vsyncpa [#allocation3], 1
    %s352 = scalar_lea.sflag [#allocation3], 1
    %353 = vsyncpa %s352, 1
    %354 = vsyncpa [#allocation6], 1
    %s355 = scalar_lea.sflag [#allocation6], 1
    %356 = vsyncpa %s355, 1
    %357 = vsyncpa [#allocation4], 1
    %s358 = scalar_lea.sflag [#allocation4], 1
    %359 = vsyncpa %s358, 1

</llo_original>
